<compile_context>
chip_gen: v6e
topology: v6e:2x2x1
jax: 0.10.0
libtpu: 0.0.40
codegen_flags: <defaults>
</compile_context>

<pallas_src>
import jax
import jax.numpy as jnp
from jax.experimental import pallas as pl
from jax.experimental.pallas import tpu as pltpu


_LANE_CANDIDATES = (4096, 2048, 1024, 512, 256, 128)  # lane-dense last-dim widths
_MIN_MULTISTEP_BYTES = 2 * 1024 * 1024                 # split slabs bigger than this
_MIN_GRID_STEPS = 4                                    # 2 TCs (v7x) x pipeline overlap


def _sublane_multiple(dtype):
    itemsize = jnp.dtype(dtype).itemsize
    return {4: 8, 2: 16, 1: 32}.get(itemsize, 8)


def _target_block_bytes():
    """~4 MiB everywhere; ~8 MiB on v7x-class chips (higher HBM bandwidth per TC)."""
    try:
        kind = jax.devices()[0].device_kind.lower()
    except Exception:
        kind = ""
    if "7" in kind:          # e.g. "tpu7x"
        return 8 * 1024 * 1024
    return 4 * 1024 * 1024


def _smu1_math_f32(x_f32, c1, c2, mu_sq4):
    # 0.5*((1+a)x + sqrt(((1-a)x)^2 + mu^2)) == c1*x + sqrt((c2*x)^2 + 0.25*mu^2)
    return c1 * x_f32 + jnp.sqrt(jnp.square(c2 * x_f32) + mu_sq4)


def _smu1_kernel(consts_ref, x_ref, o_ref):
    # consts_ref: f32[3] in SMEM = (c1, c2, 0.25*mu^2); x_ref/o_ref: VMEM tiles.
    x = x_ref[...].astype(jnp.float32)
    c1 = consts_ref[0]
    c2 = consts_ref[1]
    mu_sq4 = consts_ref[2]
    o_ref[...] = _smu1_math_f32(x, c1, c2, mu_sq4).astype(o_ref.dtype)


def smu1(x, mu, alpha=0.25):
    """SMU-1 activation. x: any shape (e.g. NCHW), mu: scalar parameter."""
    orig_shape = x.shape
    dtype = x.dtype
    total = x.size
    itemsize = jnp.dtype(dtype).itemsize
    sub = _sublane_multiple(dtype)

    # Trace-time constants (the /2 folded in); kept f32 regardless of x dtype.
    alpha_f = jnp.asarray(alpha, jnp.float32)
    mu_f = jnp.asarray(mu, jnp.float32)
    c1 = 0.5 * (1.0 + alpha_f)
    c2 = 0.5 * (1.0 - alpha_f)
    mu_sq4 = 0.25 * jnp.square(mu_f)
    consts = jnp.stack([c1, c2, mu_sq4])  # f32[3] -> SMEM inside the kernel

    x_flat = jnp.ravel(x)

    # Widest lane-dense last dim that divides the element count -> zero-copy reshape.
    lane = None
    for cand in _LANE_CANDIDATES:
        if total % cand == 0:
            lane = cand
            break

    if lane is not None:
        aligned = total
    else:
        lane = 128
        aligned = (total // lane) * lane  # 128-aligned prefix; tail handled in jnp

    if aligned == 0:
        # Fewer than 128 elements: a kernel launch is pure overhead.
        y = _smu1_math_f32(x_flat.astype(jnp.float32), c1, c2, mu_sq4)
        return y.astype(dtype).reshape(orig_shape)

    rows = aligned // lane
    x2d = x_flat[:aligned].reshape(rows, lane)

    block_bytes = _target_block_bytes()
    block_rows = max(sub, (block_bytes // (lane * itemsize)) // sub * sub)

    # Guarantee a multi-step grid on slabs big enough to matter: keeps both v7x
    # TensorCores busy and gives the double-buffered pipeline work to overlap.
    slab_bytes = rows * lane * itemsize
    if slab_bytes > _MIN_MULTISTEP_BYTES:
        cap = max(sub, pl.cdiv(pl.cdiv(rows, _MIN_GRID_STEPS), sub) * sub)
        block_rows = min(block_rows, cap)
    block_rows = min(block_rows, rows)  # full-extent dims are always legal

    grid = (pl.cdiv(rows, block_rows),)

    # Double-buffered in+out blocks plus headroom; stays below 64 MiB (v7x physical).
    vmem_limit = 48 * 1024 * 1024 if block_bytes > 4 * 1024 * 1024 else 32 * 1024 * 1024

    out2d = pl.pallas_call(
        _smu1_kernel,
        out_shape=jax.ShapeDtypeStruct((rows, lane), dtype),
        grid=grid,
        in_specs=[
            pl.BlockSpec(memory_space=pltpu.MemorySpace.SMEM),   # consts f32[3]
            # TODO(synk): pipeline_mode=pl.Buffered(3) if an xprof trace shows
            # exposed DMA at block boundaries on v7x.
            pl.BlockSpec((block_rows, lane), lambda i: (i, 0)),
        ],
        out_specs=pl.BlockSpec((block_rows, lane), lambda i: (i, 0)),
        compiler_params=pltpu.CompilerParams(
            dimension_semantics=("parallel",),
            vmem_limit_bytes=vmem_limit,
        ),
    )(consts, x2d)

    out_flat = out2d.reshape(-1)
    if aligned != total:
        # Ragged tail (< 128 elements): plain jnp, no pad/slice copies of the bulk.
        tail = x_flat[aligned:].astype(jnp.float32)
        tail_out = _smu1_math_f32(tail, c1, c2, mu_sq4).astype(dtype)
        out_flat = jnp.concatenate([out_flat, tail_out])
    return out_flat.reshape(orig_shape)


def smu1_ref(x, mu, alpha=0.25):
    xf = x.astype(jnp.float32)
    return ((1.0 + alpha) * xf
            + jnp.sqrt(jnp.square(xf - alpha * xf)
                       + jnp.square(jnp.float32(mu)))) / 2.0


if __name__ == "__main__":
    key = jax.random.PRNGKey(0)
    # nn.Parameter(torch.tensor(4.352665993287951e-09)) equivalent.
    mu = jnp.float32(4.352665993287951e-09)
    alpha = 0.25

    # Primary case: small NCHW activation like the PyTorch module would see.
    x = jax.random.normal(key, (2, 4, 16, 16), dtype=jnp.float32)
    out = jax.block_until_ready(smu1(x, mu, alpha))
    assert out.shape == x.shape and out.dtype == x.dtype
    assert jnp.allclose(out, smu1_ref(x, mu, alpha), atol=1e-6, rtol=1e-6)

    # Ragged sizes: 128-aligned-prefix + jnp tail, and the tiny all-jnp fallback.
    for shape in ((2, 3, 67), (3, 5, 7)):
        xr = jax.random.normal(jax.random.PRNGKey(1), shape, dtype=jnp.float32)
        outr = jax.block_until_ready(smu1(xr, mu, alpha))
        assert outr.shape == xr.shape and outr.dtype == xr.dtype
        assert jnp.allclose(outr, smu1_ref(xr, mu, alpha), atol=1e-6, rtol=1e-6)

    # bf16 path (sublane packing = 16).
    xb = jax.random.normal(jax.random.PRNGKey(2), (2, 4, 16, 16), dtype=jnp.bfloat16)
    outb = jax.block_until_ready(smu1(xb, mu, alpha))
    assert outb.shape == xb.shape and outb.dtype == jnp.bfloat16
    assert jnp.allclose(outb.astype(jnp.float32), smu1_ref(xb, mu, alpha),
                        atol=2e-2, rtol=2e-2)

    # Multi-block grid path (slab > 2 MiB -> >= 4 grid steps).
    xm = jax.random.normal(jax.random.PRNGKey(3), (512, 2048), dtype=jnp.float32)
    outm = jax.block_until_ready(smu1(xm, mu, alpha))
    assert jnp.allclose(outm, smu1_ref(xm, mu, alpha), atol=1e-6, rtol=1e-6)

    print("KERNEL_OK")
</pallas_src>

<mosaic_0001>
module attributes {stable_mosaic.version = 11 : i64} {
  func.func @_smu1_kernel(%arg0: i32, %arg1: memref<3xf32, #tpu.memory_space<smem>>, %arg2: memref<1x2048xf32, #tpu.memory_space<vmem>>, %arg3: memref<1x2048xf32, #tpu.memory_space<vmem>>) attributes {dimension_semantics = [#tpu.dimension_semantics<parallel>], iteration_bounds = array<i64: 1>, scalar_prefetch = 0 : i64, scratch_operands = 0 : i64, tpu.core_type = #tpu.core_type<tc>, window_params = [{transform_indices = @transform_0, window_bounds = array<i64: 3>}, {transform_indices = @transform_1, window_bounds = array<i64: 1, 2048>}, {transform_indices = @transform_2, window_bounds = array<i64: 1, 2048>}]} {
    %c0 = arith.constant 0 : index
    %c0_0 = arith.constant 0 : index
    %0 = vector.load %arg2[%c0, %c0_0] : memref<1x2048xf32, #tpu.memory_space<vmem>>, vector<1x2048xf32>
    %c0_1 = arith.constant 0 : index
    %1 = memref.load %arg1[%c0_1] : memref<3xf32, #tpu.memory_space<smem>>
    %c1 = arith.constant 1 : index
    %2 = memref.load %arg1[%c1] : memref<3xf32, #tpu.memory_space<smem>>
    %c2 = arith.constant 2 : index
    %3 = memref.load %arg1[%c2] : memref<3xf32, #tpu.memory_space<smem>>
    %4 = vector.broadcast %1 : f32 to vector<1x2048xf32>
    %5 = arith.mulf %4, %0 : vector<1x2048xf32>
    %6 = vector.broadcast %2 : f32 to vector<1x2048xf32>
    %7 = arith.mulf %6, %0 : vector<1x2048xf32>
    %8 = arith.mulf %7, %7 : vector<1x2048xf32>
    %9 = vector.broadcast %3 : f32 to vector<1x2048xf32>
    %10 = arith.addf %8, %9 : vector<1x2048xf32>
    %11 = math.sqrt %10 : vector<1x2048xf32>
    %12 = arith.addf %5, %11 : vector<1x2048xf32>
    %c0_2 = arith.constant 0 : index
    %c0_3 = arith.constant 0 : index
    %13 = vector.load %arg3[%c0_2, %c0_3] : memref<1x2048xf32, #tpu.memory_space<vmem>>, vector<1x2048xf32>
    tpu.vector_store %arg3[%c0_2, %c0_3], %12 {strides = array<i32>} : memref<1x2048xf32, #tpu.memory_space<vmem>>, vector<1x2048xf32>,
    return
  }
  func.func @transform_0(%arg0: i32) -> i32 {
    %c0_i32 = arith.constant 0 : i32
    %c0_i32_0 = arith.constant 0 : i32
    return %c0_i32 : i32
  }
  func.func @transform_1(%arg0: i32) -> (i32, i32) {
    %c0_i32 = arith.constant 0 : i32
    %c0_i32_0 = arith.constant 0 : i32
    return %arg0, %c0_i32 : i32, i32
  }
  func.func @transform_2(%arg0: i32) -> (i32, i32) {
    %c0_i32 = arith.constant 0 : i32
    %c0_i32_0 = arith.constant 0 : i32
    return %arg0, %c0_i32 : i32, i32
  }
}

</mosaic_0001>

<llo_original>
// kernel: tpu_custom_call.1
$region0: #{tpu_custom_call.1}
  #allocation0 [shape = 'u32[]', space=smem, size = 0x4, offset = 0x4, fixed_abs, tag = 'smem constant byte address 0x4 - core index']
  #allocation1 [shape = 'u32[144,128]{1,0:T(1,128)}', space=vmem, size = 0x12000, scoped, tag = 'internal scratch']
  %s0 = inlined_call_operand.hbm [shape: f32[3], index: 0, kind: input, shape index: {}]
  %s1 = inlined_call_operand.hbm [shape: f32[1,2048], index: 1, kind: input, shape index: {}]
  %s2 = inlined_call_operand.hbm [shape: f32[1,2048], index: 2, kind: output, shape index: {}]
  %s3 = sld [smem:[#allocation0]]
  $region26: #{tpu_custom_call.1} parent=0
    _
  %s5 = ssub.s32 1, %s3
  %s6 = scalar_select 0, %s5, %s3
  $region1: #{tpu_custom_call.1} parent=0
    #allocation2 [shape = 'u8[512]{0}', space=smem, size = 0x200, scoped, tag = 'input window, operand 0, single buffered']
    #allocation3 [shape = 's32[1]{0}', space=sflag, size = 0x4, scoped, tag = 'scoped memory for tpu_custom_call.1']
    #allocation4 [shape = 's32[1]{0}', space=sflag, size = 0x4, scoped, tag = 'scoped memory for tpu_custom_call.1']
    #allocation5 [shape = 's32[1]{0}', space=sflag, size = 0x4, scoped, tag = 'scoped memory for tpu_custom_call.1']
    #allocation6 [shape = 'u8[8192]{0}', space=vmem, size = 0x2000, scoped, tag = 'input window, operand 1, single buffered']
    #allocation7 [shape = 'u8[8192]{0}', space=vmem, size = 0x2000, scoped, tag = 'output window, operand 0, single buffered']
    %7 = vsyncpa [#allocation5], 0
    %8 = vsyncpa [#allocation3], 0
    %9 = vsyncpa [#allocation4], 0
    // Predicated region
    $region2: #{tpu_custom_call.1} parent=1 // pred_check
      _
    $region3: #{tpu_custom_call.1} parent=1 // pred_check_branch
      %11 = sbr.rel (0) target = $region5
    $region4: #{tpu_custom_call.1} parent=1 // pred_region
      %s13 = ssub.s32 16, 16
      %14 = vsyncadd [#allocation5], %s13
      %17 = dma.hbm_to_smem %s0, 16, [#allocation2], [#allocation5]
    $region5: #{tpu_custom_call.1} parent=1 // pred_fallthru
      _
    // Predicated region
    $region6: #{tpu_custom_call.1} parent=1 // pred_check
      _
    $region7: #{tpu_custom_call.1} parent=1 // pred_check_branch
      %19 = sbr.rel (0) target = $region9
    $region8: #{tpu_custom_call.1} parent=1 // pred_region
      %s21 = ssub.s32 256, 256
      %22 = vsyncadd [#allocation3], %s21
      %s24 = sshll.u32 [#allocation6], 4
      %s25 = int_to_ptr.vmem [resolvable:$true] %s24
      %27 = dma.hbm_to_vmem [thread:$0]  %s1, 256, %s25, [#allocation3]
    $region9: #{tpu_custom_call.1} parent=1 // pred_fallthru
      _
    // Predicated region
    $region10: #{tpu_custom_call.1} parent=1 // pred_check
      _
    $region11: #{tpu_custom_call.1} parent=1 // pred_check_branch
      %29 = sbr.rel (0) target = $region13
    $region12: #{tpu_custom_call.1} parent=1 // pred_region
      %30 = dma.done [#allocation5], 16
    $region13: #{tpu_custom_call.1} parent=1 // pred_fallthru
      _
    // Predicated region
    $region14: #{tpu_custom_call.1} parent=1 // pred_check
      _
    $region15: #{tpu_custom_call.1} parent=1 // pred_check_branch
      %32 = sbr.rel (0) target = $region17
    $region16: #{tpu_custom_call.1} parent=1 // pred_region
      %33 = dma.done [#allocation3], 256
    $region17: #{tpu_custom_call.1} parent=1 // pred_fallthru
      _
    %34 = sfence
    %v35 = vld [vmem:[#allocation6] sm:$0xff]
    %v36 = vld [vmem:[#allocation6 + $0x8] sm:$0xff]
    %s37 = sld [smem:[#allocation2]]
    %s38 = sld [smem:[#allocation2 + $0x1]]
    %s39 = sld [smem:[#allocation2 + $0x2]]
    %v40 = vstv %s37
    %v41 = vmul.f32 %v40, %v35
    %v42 = vmul.f32 %v40, %v36
    %v43 = vstv %s38
    %v44 = vmul.f32 %v43, %v35
    %v45 = vmul.f32 %v43, %v36
    %v46 = vmul.f32 %v44, %v44
    %v47 = vmul.f32 %v45, %v45
    %v48 = vstv %s39
    %v49 = vadd.f32 %v46, %v48
    %v50 = vadd.f32 %v47, %v48
    %v51 = vrsqrt.pop %v49
    %v52 = vmul.f32 %v49, %v51
    %vm53 = vcmp.eq.f32.partialorder %v49, inf
    %v54 = vsel %vm53, %v49, %v52
    %vm55 = vcmp.eq.f32.partialorder %v49, 0.0
    %v56 = vand.u32 %v49, 2147483648
    %v57 = vsel %vm55, %v56, %v54
    %v58 = vrsqrt.pop %v50
    %v59 = vmul.f32 %v50, %v58
    %vm60 = vcmp.eq.f32.partialorder %v50, inf
    %v61 = vsel %vm60, %v50, %v59
    %vm62 = vcmp.eq.f32.partialorder %v50, 0.0
    %v63 = vand.u32 %v50, 2147483648
    %v64 = vsel %vm62, %v63, %v61
    %v65 = vadd.f32 %v41, %v57
    %v66 = vadd.f32 %v42, %v64
    %67 = vst [vmem:[#allocation7] sm:$0xff] %v65
    %68 = vst [vmem:[#allocation7 + $0x8] sm:$0xff] %v66
    // Predicated region
    $region18: #{tpu_custom_call.1} parent=1 // pred_check
      _
    $region19: #{tpu_custom_call.1} parent=1 // pred_check_branch
      %70 = sbr.rel (0) target = $region21
    $region20: #{tpu_custom_call.1} parent=1 // pred_region
      %s72 = ssub.s32 256, 256
      %73 = vsyncadd [#allocation4], %s72
      %s75 = sshll.u32 [#allocation7], 4
      %s76 = int_to_ptr.vmem [resolvable:$true] %s75
      %78 = dma.vmem_to_hbm [thread:$0]  %s76, 256, %s2, [#allocation4]
    $region21: #{tpu_custom_call.1} parent=1 // pred_fallthru
      _
    // Predicated region
    $region22: #{tpu_custom_call.1} parent=1 // pred_check
      _
    $region23: #{tpu_custom_call.1} parent=1 // pred_check_branch
      %80 = sbr.rel (0) target = $region25
    $region24: #{tpu_custom_call.1} parent=1 // pred_region
      %81 = dma.done [#allocation4], 256
    $region25: #{tpu_custom_call.1} parent=1 // pred_fallthru
      _
    %82 = vsyncpa [#allocation3], 1
    %83 = vsyncpa [#allocation4], 1
    %84 = vsyncpa [#allocation5], 1

</llo_original>
